<compile_context>
chip_gen: v7x
topology: tpu7x:2x2x1
jax: 0.10.0
libtpu: 0.0.40
codegen_flags: <defaults>
</compile_context>

<pallas_src>
import jax
import jax.numpy as jnp
from jax.experimental import pallas as pl
from jax.experimental.pallas import tpu as pltpu


def _relu_conv1x1_kernel(x_ref, w_ref, o_ref):
    # x_ref: (C_in, H*W) f32, w_ref: (C_out, C_in) bf16, o_ref: (C_out, H*W) f32
    x = jnp.maximum(x_ref[...], 0.0)                    # ReLU on the VPU, stays f32
    w = w_ref[...].astype(jnp.float32)                  # bf16 weight -> f32 (rides VPU)
    o_ref[...] = jnp.dot(
        w, x, preferred_element_type=jnp.float32        # f32 MXU matmul + f32 accumulate
    ).astype(o_ref.dtype)


def prepare_conv1x1_weight(w_oihw: jax.Array) -> jax.Array:
    """One-time (model-init) weight prep: (C_out, C_in, 1, 1) f32 -> (C_out, C_in) bf16."""
    c_out, c_in = w_oihw.shape[0], w_oihw.shape[1]
    return w_oihw.reshape(c_out, c_in).astype(jnp.bfloat16)


def relu_conv1x1(x_nchw: jax.Array, w_prepared: jax.Array) -> jax.Array:
    """ReLU followed by 1x1 conv (stride 1, no bias), NCHW in / NCHW out.

    `w_prepared` is the (C_out, C_in) bf16 array from prepare_conv1x1_weight().
    """
    n, c_in, h, w = x_nchw.shape
    c_out = w_prepared.shape[0]
    hw = h * w

    # Free view of contiguous NCHW: (N, C_in, H*W). No transpose.
    x_mat = x_nchw.reshape(n, c_in, hw)

    flops = 2 * n * c_out * c_in * hw
    bytes_accessed = (
        x_mat.size * x_mat.dtype.itemsize
        + w_prepared.size * w_prepared.dtype.itemsize
        + n * c_out * hw * jnp.dtype(x_nchw.dtype).itemsize
    )

    out = pl.pallas_call(
        _relu_conv1x1_kernel,
        out_shape=jax.ShapeDtypeStruct((n, c_out, hw), x_nchw.dtype),
        grid_spec=pltpu.PrefetchScalarGridSpec(
            num_scalar_prefetch=0,
            grid=(n,),  # one step per batch element; weight block index is
                        # constant across the grid so it is DMA'd only once.
            in_specs=[
                # Batch dim squeezed out; kernel sees (C_in, H*W) = full extent.
                pl.BlockSpec((None, c_in, hw), lambda i: (i, 0, 0)),
                pl.BlockSpec((c_out, c_in), lambda i: (0, 0)),
            ],
            out_specs=pl.BlockSpec((None, c_out, hw), lambda i: (i, 0, 0)),
        ),
        compiler_params=pltpu.CompilerParams(
            # Batch elements are independent -> shard across v7x's 2 TCs when n > 1.
            dimension_semantics=("parallel",),
        ),
        cost_estimate=pl.CostEstimate(
            flops=flops, transcendentals=0, bytes_accessed=bytes_accessed
        ),
    )(x_mat, w_prepared)

    # Free view back to NCHW.
    return out.reshape(n, c_out, h, w)


if __name__ == "__main__":
    key = jax.random.PRNGKey(0)
    kx, kw = jax.random.split(key)

    # Shapes implied by the module: x250 is [1, 440, 7, 7],
    # conv2d80 weight is [440, 440, 1, 1] (bias=False).
    x = jax.random.normal(kx, (1, 440, 7, 7), dtype=jnp.float32)
    w = (jax.random.normal(kw, (440, 440, 1, 1), dtype=jnp.float32)
         * (1.0 / jnp.sqrt(440.0)))  # deterministic, roughly kaiming-scaled

    # One-time weight preparation (would live at model init in real use).
    w_prepared = prepare_conv1x1_weight(w)
    jax.block_until_ready(w_prepared)

    out = relu_conv1x1(x, w_prepared)
    jax.block_until_ready(out)

    # Sanity check against a plain-JAX f32 reference of the same math.
    # Only the weight is bf16 (activation and accumulation stay f32), so the
    # tolerance can be much tighter than the previous bf16xbf16 version.
    x_rel = jnp.maximum(x, 0.0)
    ref = jnp.einsum("nchw,oc->nohw", x_rel, w[:, :, 0, 0])
    assert out.shape == (1, 440, 7, 7)
    assert jnp.allclose(out, ref, atol=2e-2, rtol=2e-2)

    print("KERNEL_OK")
</pallas_src>

<mosaic_0001>
module attributes {stable_mosaic.version = 11 : i64} {
  func.func @_relu_conv1x1_kernel(%arg0: i32, %arg1: memref<1x440x49xf32, #tpu.memory_space<vmem>>, %arg2: memref<440x440xbf16, #tpu.memory_space<vmem>>, %arg3: memref<1x440x49xf32, #tpu.memory_space<vmem>>) attributes {dimension_semantics = [#tpu.dimension_semantics<parallel>], iteration_bounds = array<i64: 1>, scalar_prefetch = 0 : i64, scratch_operands = 0 : i64, tpu.core_type = #tpu.core_type<tc>, window_params = [{transform_indices = @transform_0, window_bounds = array<i64: 1, 440, 49>}, {pipeline_mode = #tpu.pipeline_mode<synchronous>, transform_indices = @transform_1, window_bounds = array<i64: 440, 440>}, {transform_indices = @transform_2, window_bounds = array<i64: 1, 440, 49>}]} {
    %c0 = arith.constant 0 : index
    %c0_0 = arith.constant 0 : index
    %c0_1 = arith.constant 0 : index
    %0 = vector.load %arg1[%c0, %c0_0, %c0_1] : memref<1x440x49xf32, #tpu.memory_space<vmem>>, vector<1x440x49xf32>
    %1 = vector.shape_cast %0 : vector<1x440x49xf32> to vector<440x49xf32>
    %cst = arith.constant 0.000000e+00 : f32
    %2 = vector.broadcast %cst : f32 to vector<440x49xf32>
    %3 = arith.maximumf %1, %2 : vector<440x49xf32>
    %c0_2 = arith.constant 0 : index
    %c0_3 = arith.constant 0 : index
    %4 = vector.load %arg2[%c0_2, %c0_3] : memref<440x440xbf16, #tpu.memory_space<vmem>>, vector<440x440xbf16>
    %5 = arith.extf %4 : vector<440x440xbf16> to vector<440x440xf32>
    %cst_4 = arith.constant dense<0.000000e+00> : vector<440x49xf32>
    %6 = tpu.matmul %5, %3, %cst_4 {dimension_numbers = #tpu.dot_dimension_numbers<[1], [0], [0], [1], [0, 0, 1, 1], [], []>} : vector<440x440xf32>, vector<440x49xf32>, vector<440x49xf32> -> vector<440x49xf32>
    %c0_5 = arith.constant 0 : index
    %c0_6 = arith.constant 0 : index
    %c0_7 = arith.constant 0 : index
    %7 = vector.load %arg3[%c0_5, %c0_6, %c0_7] : memref<1x440x49xf32, #tpu.memory_space<vmem>>, vector<1x440x49xf32>
    %8 = vector.shape_cast %7 : vector<1x440x49xf32> to vector<440x49xf32>
    %9 = vector.shape_cast %6 : vector<440x49xf32> to vector<1x440x49xf32>
    tpu.vector_store %arg3[%c0_5, %c0_6, %c0_7], %9 {strides = array<i32>} : memref<1x440x49xf32, #tpu.memory_space<vmem>>, vector<1x440x49xf32>,
    return
  }
  func.func @transform_0(%arg0: i32) -> (i32, i32, i32) {
    %c0_i32 = arith.constant 0 : i32
    %c0_i32_0 = arith.constant 0 : i32
    %c0_i32_1 = arith.constant 0 : i32
    return %arg0, %c0_i32, %c0_i32_0 : i32, i32, i32
  }
  func.func @transform_1(%arg0: i32) -> (i32, i32) {
    %c0_i32 = arith.constant 0 : i32
    %c0_i32_0 = arith.constant 0 : i32
    %c0_i32_1 = arith.constant 0 : i32
    return %c0_i32, %c0_i32_0 : i32, i32
  }
  func.func @transform_2(%arg0: i32) -> (i32, i32, i32) {
    %c0_i32 = arith.constant 0 : i32
    %c0_i32_0 = arith.constant 0 : i32
    %c0_i32_1 = arith.constant 0 : i32
    return %arg0, %c0_i32, %c0_i32_0 : i32, i32, i32
  }
}

</mosaic_0001>

<llo_original>
// kernel: tpu_custom_call.1
$region0: #{tpu_custom_call.1}
  #allocation0 [shape = 'u32[]', space=smem, size = 0x4, offset = 0x4, fixed_abs, tag = 'smem constant byte address 0x4 - core index']
  #allocation1 [shape = 'u32[144,128]{1,0:T(1,128)}', space=vmem, size = 0x12000, scoped, tag = 'internal scratch']
  %s0 = inlined_call_operand.vmem [shape: f32[1,440,49], index: 0, kind: input, shape index: {}]
  %s1 = inlined_call_operand.hbm [shape: bf16[440,440], index: 1, kind: input, shape index: {}]
  %s2 = inlined_call_operand.vmem [shape: f32[1,440,49], index: 2, kind: output, shape index: {}]
  %s3 = sld [smem:[#allocation0]]
  $region22: #{tpu_custom_call.1} parent=0
    _
  %s5 = ssub.s32 1, %s3
  %s6 = scalar_select 0, %s5, %s3
  $region1: #{tpu_custom_call.1} parent=0
    #allocation2 [shape = 'u8[450560]{0}', space=vmem, size = 0x6e000, scoped, tag = 'input window, operand 1, single buffered']
    #allocation3 [shape = 's32[1]{0}', space=sflag, size = 0x4, scoped, tag = 'scoped memory for tpu_custom_call.1']
    %7 = vsyncpa [#allocation3], 0
    // Predicated region
    $region2: #{tpu_custom_call.1} parent=1 // pred_check
      _
    $region3: #{tpu_custom_call.1} parent=1 // pred_check_branch
      %9 = sbr.rel (0) target = $region5
    $region4: #{tpu_custom_call.1} parent=1 // pred_region
      _
    $region5: #{tpu_custom_call.1} parent=1 // pred_fallthru
      _
    // Predicated region
    $region6: #{tpu_custom_call.1} parent=1 // pred_check
      _
    $region7: #{tpu_custom_call.1} parent=1 // pred_check_branch
      %11 = sbr.rel (0) target = $region9
    $region8: #{tpu_custom_call.1} parent=1 // pred_region
      %s13 = ssub.s32 14080, 14080
      %14 = vsyncadd [#allocation3], %s13
      %s15 = sshll.u32 [#allocation2], 4
      %s16 = int_to_ptr.vmem [resolvable:$true] %s15
      %21 = dma.hbm_to_vmem [thread:$0]  %s1, 14080, %s16, [#allocation3], 256, 256, 16
    $region9: #{tpu_custom_call.1} parent=1 // pred_fallthru
      _
    // Predicated region
    $region10: #{tpu_custom_call.1} parent=1 // pred_check
      _
    $region11: #{tpu_custom_call.1} parent=1 // pred_check_branch
      %23 = sbr.rel (0) target = $region13
    $region12: #{tpu_custom_call.1} parent=1 // pred_region
      %24 = dma.done [#allocation3], 14080
    $region13: #{tpu_custom_call.1} parent=1 // pred_fallthru
      _
    %v25 = vld [vmem:[%s0] sm:$0xff]
    %v26 = vld [vmem:[%s0 + $0x8] sm:$0xff]
    %v27 = vld [vmem:[%s0 + $0x10] sm:$0xff]
    %v28 = vld [vmem:[%s0 + $0x18] sm:$0xff]
    %v29 = vld [vmem:[%s0 + $0x20] sm:$0xff]
    %v30 = vld [vmem:[%s0 + $0x28] sm:$0xff]
    %v31 = vld [vmem:[%s0 + $0x30] sm:$0xff]
    %v32 = vld [vmem:[%s0 + $0x38] sm:$0xff]
    %v33 = vld [vmem:[%s0 + $0x40] sm:$0xff]
    %v34 = vld [vmem:[%s0 + $0x48] sm:$0xff]
    %v35 = vld [vmem:[%s0 + $0x50] sm:$0xff]
    %v36 = vld [vmem:[%s0 + $0x58] sm:$0xff]
    %v37 = vld [vmem:[%s0 + $0x60] sm:$0xff]
    %v38 = vld [vmem:[%s0 + $0x68] sm:$0xff]
    %v39 = vld [vmem:[%s0 + $0x70] sm:$0xff]
    %v40 = vld [vmem:[%s0 + $0x78] sm:$0xff]
    %v41 = vld [vmem:[%s0 + $0x80] sm:$0xff]
    %v42 = vld [vmem:[%s0 + $0x88] sm:$0xff]
    %v43 = vld [vmem:[%s0 + $0x90] sm:$0xff]
    %v44 = vld [vmem:[%s0 + $0x98] sm:$0xff]
    %v45 = vld [vmem:[%s0 + $0xa0] sm:$0xff]
    %v46 = vld [vmem:[%s0 + $0xa8] sm:$0xff]
    %v47 = vld [vmem:[%s0 + $0xb0] sm:$0xff]
    %v48 = vld [vmem:[%s0 + $0xb8] sm:$0xff]
    %v49 = vld [vmem:[%s0 + $0xc0] sm:$0xff]
    %v50 = vld [vmem:[%s0 + $0xc8] sm:$0xff]
    %v51 = vld [vmem:[%s0 + $0xd0] sm:$0xff]
    %v52 = vld [vmem:[%s0 + $0xd8] sm:$0xff]
    %v53 = vld [vmem:[%s0 + $0xe0] sm:$0xff]
    %v54 = vld [vmem:[%s0 + $0xe8] sm:$0xff]
    %v55 = vld [vmem:[%s0 + $0xf0] sm:$0xff]
    %v56 = vld [vmem:[%s0 + $0xf8] sm:$0xff]
    %v57 = vld [vmem:[%s0 + $0x100] sm:$0xff]
    %v58 = vld [vmem:[%s0 + $0x108] sm:$0xff]
    %v59 = vld [vmem:[%s0 + $0x110] sm:$0xff]
    %v60 = vld [vmem:[%s0 + $0x118] sm:$0xff]
    %v61 = vld [vmem:[%s0 + $0x120] sm:$0xff]
    %v62 = vld [vmem:[%s0 + $0x128] sm:$0xff]
    %v63 = vld [vmem:[%s0 + $0x130] sm:$0xff]
    %v64 = vld [vmem:[%s0 + $0x138] sm:$0xff]
    %v65 = vld [vmem:[%s0 + $0x140] sm:$0xff]
    %v66 = vld [vmem:[%s0 + $0x148] sm:$0xff]
    %v67 = vld [vmem:[%s0 + $0x150] sm:$0xff]
    %v68 = vld [vmem:[%s0 + $0x158] sm:$0xff]
    %v69 = vld [vmem:[%s0 + $0x160] sm:$0xff]
    %v70 = vld [vmem:[%s0 + $0x168] sm:$0xff]
    %v71 = vld [vmem:[%s0 + $0x170] sm:$0xff]
    %v72 = vld [vmem:[%s0 + $0x178] sm:$0xff]
    %v73 = vld [vmem:[%s0 + $0x180] sm:$0xff]
    %v74 = vld [vmem:[%s0 + $0x188] sm:$0xff]
    %v75 = vld [vmem:[%s0 + $0x190] sm:$0xff]
    %v76 = vld [vmem:[%s0 + $0x198] sm:$0xff]
    %v77 = vld [vmem:[%s0 + $0x1a0] sm:$0xff]
    %v78 = vld [vmem:[%s0 + $0x1a8] sm:$0xff]
    %v79 = vld [vmem:[%s0 + $0x1b0] sm:$0xff]
    %v80 = vmax.f32 %v25, 0.0
    %v81 = vmax.f32 %v26, 0.0
    %v82 = vmax.f32 %v27, 0.0
    %v83 = vmax.f32 %v28, 0.0
    %v84 = vmax.f32 %v29, 0.0
    %v85 = vmax.f32 %v30, 0.0
    %v86 = vmax.f32 %v31, 0.0
    %v87 = vmax.f32 %v32, 0.0
    %v88 = vmax.f32 %v33, 0.0
    %v89 = vmax.f32 %v34, 0.0
    %v90 = vmax.f32 %v35, 0.0
    %v91 = vmax.f32 %v36, 0.0
    %v92 = vmax.f32 %v37, 0.0
    %v93 = vmax.f32 %v38, 0.0
    %v94 = vmax.f32 %v39, 0.0
    %v95 = vmax.f32 %v40, 0.0
    %v96 = vmax.f32 %v41, 0.0
    %v97 = vmax.f32 %v42, 0.0
    %v98 = vmax.f32 %v43, 0.0
    %v99 = vmax.f32 %v44, 0.0
    %v100 = vmax.f32 %v45, 0.0
    %v101 = vmax.f32 %v46, 0.0
    %v102 = vmax.f32 %v47, 0.0
    %v103 = vmax.f32 %v48, 0.0
    %v104 = vmax.f32 %v49, 0.0
    %v105 = vmax.f32 %v50, 0.0
    %v106 = vmax.f32 %v51, 0.0
    %v107 = vmax.f32 %v52, 0.0
    %v108 = vmax.f32 %v53, 0.0
    %v109 = vmax.f32 %v54, 0.0
    %v110 = vmax.f32 %v55, 0.0
    %v111 = vmax.f32 %v56, 0.0
    %v112 = vmax.f32 %v57, 0.0
    %v113 = vmax.f32 %v58, 0.0
    %v114 = vmax.f32 %v59, 0.0
    %v115 = vmax.f32 %v60, 0.0
    %v116 = vmax.f32 %v61, 0.0
    %v117 = vmax.f32 %v62, 0.0
    %v118 = vmax.f32 %v63, 0.0
    %v119 = vmax.f32 %v64, 0.0
    %v120 = vmax.f32 %v65, 0.0
    %v121 = vmax.f32 %v66, 0.0
    %v122 = vmax.f32 %v67, 0.0
    %v123 = vmax.f32 %v68, 0.0
    %v124 = vmax.f32 %v69, 0.0
    %v125 = vmax.f32 %v70, 0.0
    %v126 = vmax.f32 %v71, 0.0
    %v127 = vmax.f32 %v72, 0.0
    %v128 = vmax.f32 %v73, 0.0
    %v129 = vmax.f32 %v74, 0.0
    %v130 = vmax.f32 %v75, 0.0
    %v131 = vmax.f32 %v76, 0.0
    %v132 = vmax.f32 %v77, 0.0
    %v133 = vmax.f32 %v78, 0.0
    %v134 = vmax.f32 %v79, 0.0
    %v135 = vld [vmem:[#allocation2] sm:$0xff]
    %v136 = vld [vmem:[#allocation2 + $0x8] sm:$0xff]
    %v137 = vld [vmem:[#allocation2 + $0x10] sm:$0xff]
    %v138 = vld [vmem:[#allocation2 + $0x18] sm:$0xff]
    %v139 = vld [vmem:[#allocation2 + $0x20] sm:$0xff]
    %v140 = vld [vmem:[#allocation2 + $0x28] sm:$0xff]
    %v141 = vld [vmem:[#allocation2 + $0x30] sm:$0xff]
    %v142 = vld [vmem:[#allocation2 + $0x38] sm:$0xff]
    %v143 = vld [vmem:[#allocation2 + $0x40] sm:$0xff]
    %v144 = vld [vmem:[#allocation2 + $0x48] sm:$0xff]
    %v145 = vld [vmem:[#allocation2 + $0x50] sm:$0xff]
    %v146 = vld [vmem:[#allocation2 + $0x58] sm:$0xff]
    %v147 = vld [vmem:[#allocation2 + $0x60] sm:$0xff]
    %v148 = vld [vmem:[#allocation2 + $0x68] sm:$0xff]
    %v149 = vld [vmem:[#allocation2 + $0x70] sm:$0xff]
    %v150 = vld [vmem:[#allocation2 + $0x78] sm:$0xff]
    %v151 = vld [vmem:[#allocation2 + $0x80] sm:$0xff]
    %v152 = vld [vmem:[#allocation2 + $0x88] sm:$0xff]
    %v153 = vld [vmem:[#allocation2 + $0x90] sm:$0xff]
    %v154 = vld [vmem:[#allocation2 + $0x98] sm:$0xff]
    %v155 = vld [vmem:[#allocation2 + $0xa0] sm:$0xff]
    %v156 = vld [vmem:[#allocation2 + $0xa8] sm:$0xff]
    %v157 = vld [vmem:[#allocation2 + $0xb0] sm:$0xff]
    %v158 = vld [vmem:[#allocation2 + $0xb8] sm:$0xff]
    %v159 = vld [vmem:[#allocation2 + $0xc0] sm:$0xff]
    %v160 = vld [vmem:[#allocation2 + $0xc8] sm:$0xff]
    %v161 = vld [vmem:[#allocation2 + $0xd0] sm:$0xff]
    %v162 = vld [vmem:[#allocation2 + $0xd8] sm:$0xff]
    %v163 = vld [vmem:[#allocation2 + $0xe0] sm:$0xff]
    %v164 = vld [vmem:[#allocation2 + $0xe8] sm:$0xff]
    %v165 = vld [vmem:[#allocation2 + $0xf0] sm:$0xff]
    %v166 = vld [vmem:[#allocation2 + $0xf8] sm:$0xff]
    %v167 = vld [vmem:[#allocation2 + $0x100] sm:$0xff]
    %v168 = vld [vmem:[#allocation2 + $0x108] sm:$0xff]
    %v169 = vld [vmem:[#allocation2 + $0x110] sm:$0xff]
    %v170 = vld [vmem:[#allocation2 + $0x118] sm:$0xff]
    %v171 = vld [vmem:[#allocation2 + $0x120] sm:$0xff]
    %v172 = vld [vmem:[#allocation2 + $0x128] sm:$0xff]
    %v173 = vld [vmem:[#allocation2 + $0x130] sm:$0xff]
    %v174 = vld [vmem:[#allocation2 + $0x138] sm:$0xff]
    %v175 = vld [vmem:[#allocation2 + $0x140] sm:$0xff]
    %v176 = vld [vmem:[#allocation2 + $0x148] sm:$0xff]
    %v177 = vld [vmem:[#allocation2 + $0x150] sm:$0xff]
    %v178 = vld [vmem:[#allocation2 + $0x158] sm:$0xff]
    %v179 = vld [vmem:[#allocation2 + $0x160] sm:$0xff]
    %v180 = vld [vmem:[#allocation2 + $0x168] sm:$0xff]
    %v181 = vld [vmem:[#allocation2 + $0x170] sm:$0xff]
    %v182 = vld [vmem:[#allocation2 + $0x178] sm:$0xff]
    %v183 = vld [vmem:[#allocation2 + $0x180] sm:$0xff]
    %v184 = vld [vmem:[#allocation2 + $0x188] sm:$0xff]
    %v185 = vld [vmem:[#allocation2 + $0x190] sm:$0xff]
    %v186 = vld [vmem:[#allocation2 + $0x198] sm:$0xff]
    %v187 = vld [vmem:[#allocation2 + $0x1a0] sm:$0xff]
    %v188 = vld [vmem:[#allocation2 + $0x1a8] sm:$0xff]
    %v189 = vld [vmem:[#allocation2 + $0x1b0] sm:$0xff]
    %v190 = vld [vmem:[#allocation2 + $0x1b8] sm:$0xff]
    %v191 = vld [vmem:[#allocation2 + $0x1c0] sm:$0xff]
    %v192 = vld [vmem:[#allocation2 + $0x1c8] sm:$0xff]
    %v193 = vld [vmem:[#allocation2 + $0x1d0] sm:$0xff]
    %v194 = vld [vmem:[#allocation2 + $0x1d8] sm:$0xff]
    %v195 = vld [vmem:[#allocation2 + $0x1e0] sm:$0xff]
    %v196 = vld [vmem:[#allocation2 + $0x1e8] sm:$0xff]
    %v197 = vld [vmem:[#allocation2 + $0x1f0] sm:$0xff]
    %v198 = vld [vmem:[#allocation2 + $0x1f8] sm:$0xff]
    %v199 = vld [vmem:[#allocation2 + $0x200] sm:$0xff]
    %v200 = vld [vmem:[#allocation2 + $0x208] sm:$0xff]
    %v201 = vld [vmem:[#allocation2 + $0x210] sm:$0xff]
    %v202 = vld [vmem:[#allocation2 + $0x218] sm:$0xff]
    %v203 = vld [vmem:[#allocation2 + $0x220] sm:$0xff]
    %v204 = vld [vmem:[#allocation2 + $0x228] sm:$0xff]
    %v205 = vld [vmem:[#allocation2 + $0x230] sm:$0xff]
    %v206 = vld [vmem:[#allocation2 + $0x238] sm:$0xff]
    %v207 = vld [vmem:[#allocation2 + $0x240] sm:$0xff]
    %v208 = vld [vmem:[#allocation2 + $0x248] sm:$0xff]
    %v209 = vld [vmem:[#allocation2 + $0x250] sm:$0xff]
    %v210 = vld [vmem:[#allocation2 + $0x258] sm:$0xff]
    %v211 = vld [vmem:[#allocation2 + $0x260] sm:$0xff]
    %v212 = vld [vmem:[#allocation2 + $0x268] sm:$0xff]
    %v213 = vld [vmem:[#allocation2 + $0x270] sm:$0xff]
    %v214 = vld [vmem:[#allocation2 + $0x278] sm:$0xff]
    %v215 = vld [vmem:[#allocation2 + $0x280] sm:$0xff]
    %v216 = vld [vmem:[#allocation2 + $0x288] sm:$0xff]
    %v217 = vld [vmem:[#allocation2 + $0x290] sm:$0xff]
    %v218 = vld [vmem:[#allocation2 + $0x298] sm:$0xff]
    %v219 = vld [vmem:[#allocation2 + $0x2a0] sm:$0xff]
    %v220 = vld [vmem:[#allocation2 + $0x2a8] sm:$0xff]
    %v221 = vld [vmem:[#allocation2 + $0x2b0] sm:$0xff]
    %v222 = vld [vmem:[#allocation2 + $0x2b8] sm:$0xff]
    %v223 = vld [vmem:[#allocation2 + $0x2c0] sm:$0xff]
    %v224 = vld [vmem:[#allocation2 + $0x2c8] sm:$0xff]
    %v225 = vld [vmem:[#allocation2 + $0x2d0] sm:$0xff]
    %v226 = vld [vmem:[#allocation2 + $0x2d8] sm:$0xff]
    %v227 = vld [vmem:[#allocation2 + $0x2e0] sm:$0xff]
    %v228 = vld [vmem:[#allocation2 + $0x2e8] sm:$0xff]
    %v229 = vld [vmem:[#allocation2 + $0x2f0] sm:$0xff]
    %v230 = vld [vmem:[#allocation2 + $0x2f8] sm:$0xff]
    %v231 = vld [vmem:[#allocation2 + $0x300] sm:$0xff]
    %v232 = vld [vmem:[#allocation2 + $0x308] sm:$0xff]
    %v233 = vld [vmem:[#allocation2 + $0x310] sm:$0xff]
    %v234 = vld [vmem:[#allocation2 + $0x318] sm:$0xff]
    %v235 = vld [vmem:[#allocation2 + $0x320] sm:$0xff]
    %v236 = vld [vmem:[#allocation2 + $0x328] sm:$0xff]
    %v237 = vld [vmem:[#allocation2 + $0x330] sm:$0xff]
    %v238 = vld [vmem:[#allocation2 + $0x338] sm:$0xff]
    %v239 = vld [vmem:[#allocation2 + $0x340] sm:$0xff]
    %v240 = vld [vmem:[#allocation2 + $0x348] sm:$0xff]
    %v241 = vld [vmem:[#allocation2 + $0x350] sm:$0xff]
    %v242 = vld [vmem:[#allocation2 + $0x358] sm:$0xff]
    %v243 = vld [vmem:[#allocation2 + $0x360] sm:$0xff]
    %v244 = vld [vmem:[#allocation2 + $0x368] sm:$0xff]
    %v245 = vunpack.c.l.bf16 %v135
    %v246 = vunpack.c.h.bf16 %v135
    %v247 = vunpack.c.l.bf16 %v136
    %v248 = vunpack.c.h.bf16 %v136
    %v249 = vunpack.c.l.bf16 %v137
    %v250 = vunpack.c.h.bf16 %v137
    %v251 = vunpack.c.l.bf16 %v138
    %v252 = vunpack.c.h.bf16 %v138
    %v253 = vunpack.c.l.bf16 %v139
    %v254 = vunpack.c.h.bf16 %v139
    %v255 = vunpack.c.l.bf16 %v140
    %v256 = vunpack.c.h.bf16 %v140
    %v257 = vunpack.c.l.bf16 %v141
    %v258 = vunpack.c.h.bf16 %v141
    %v259 = vunpack.c.l.bf16 %v142
    %v260 = vunpack.c.h.bf16 %v142
    %v261 = vunpack.c.l.bf16 %v143
    %v262 = vunpack.c.h.bf16 %v143
    %v263 = vunpack.c.l.bf16 %v144
    %v264 = vunpack.c.h.bf16 %v144
    %v265 = vunpack.c.l.bf16 %v145
    %v266 = vunpack.c.h.bf16 %v145
    %v267 = vunpack.c.l.bf16 %v146
    %v268 = vunpack.c.h.bf16 %v146
    %v269 = vunpack.c.l.bf16 %v147
    %v270 = vunpack.c.h.bf16 %v147
    %v271 = vunpack.c.l.bf16 %v148
    %v272 = vunpack.c.h.bf16 %v148
    %v273 = vunpack.c.l.bf16 %v149
    %v274 = vunpack.c.h.bf16 %v149
    %v275 = vunpack.c.l.bf16 %v150
    %v276 = vunpack.c.h.bf16 %v150
    %v277 = vunpack.c.l.bf16 %v151
    %v278 = vunpack.c.h.bf16 %v151
    %v279 = vunpack.c.l.bf16 %v152
    %v280 = vunpack.c.h.bf16 %v152
    %v281 = vunpack.c.l.bf16 %v153
    %v282 = vunpack.c.h.bf16 %v153
    %v283 = vunpack.c.l.bf16 %v154
    %v284 = vunpack.c.h.bf16 %v154
    %v285 = vunpack.c.l.bf16 %v155
    %v286 = vunpack.c.h.bf16 %v155
    %v287 = vunpack.c.l.bf16 %v156
    %v288 = vunpack.c.h.bf16 %v156
    %v289 = vunpack.c.l.bf16 %v157
    %v290 = vunpack.c.h.bf16 %v157
    %v291 = vunpack.c.l.bf16 %v158
    %v292 = vunpack.c.h.bf16 %v158
    %v293 = vunpack.c.l.bf16 %v159
    %v294 = vunpack.c.h.bf16 %v159
    %v295 = vunpack.c.l.bf16 %v160
    %v296 = vunpack.c.h.bf16 %v160
    %v297 = vunpack.c.l.bf16 %v161
    %v298 = vunpack.c.h.bf16 %v161
    %v299 = vunpack.c.l.bf16 %v162
    %v300 = vunpack.c.h.bf16 %v162
    %v301 = vunpack.c.l.bf16 %v163
    %v302 = vunpack.c.h.bf16 %v163
    %v303 = vunpack.c.l.bf16 %v164
    %v304 = vunpack.c.h.bf16 %v164
    %v305 = vunpack.c.l.bf16 %v165
    %v306 = vunpack.c.h.bf16 %v165
    %v307 = vunpack.c.l.bf16 %v166
    %v308 = vunpack.c.h.bf16 %v166
    %v309 = vunpack.c.l.bf16 %v167
    %v310 = vunpack.c.h.bf16 %v167
    %v311 = vunpack.c.l.bf16 %v168
    %v312 = vunpack.c.h.bf16 %v168
    %v313 = vunpack.c.l.bf16 %v169
    %v314 = vunpack.c.h.bf16 %v169
    %v315 = vunpack.c.l.bf16 %v170
    %v316 = vunpack.c.h.bf16 %v170
    %v317 = vunpack.c.l.bf16 %v171
    %v318 = vunpack.c.h.bf16 %v171
    %v319 = vunpack.c.l.bf16 %v172
    %v320 = vunpack.c.h.bf16 %v172
    %v321 = vunpack.c.l.bf16 %v173
    %v322 = vunpack.c.h.bf16 %v173
    %v323 = vunpack.c.l.bf16 %v174
    %v324 = vunpack.c.h.bf16 %v174
    %v325 = vunpack.c.l.bf16 %v175
    %v326 = vunpack.c.h.bf16 %v175
    %v327 = vunpack.c.l.bf16 %v176
    %v328 = vunpack.c.h.bf16 %v176
    %v329 = vunpack.c.l.bf16 %v177
    %v330 = vunpack.c.h.bf16 %v177
    %v331 = vunpack.c.l.bf16 %v178
    %v332 = vunpack.c.h.bf16 %v178
    %v333 = vunpack.c.l.bf16 %v179
    %v334 = vunpack.c.h.bf16 %v179
    %v335 = vunpack.c.l.bf16 %v180
    %v336 = vunpack.c.h.bf16 %v180
    %v337 = vunpack.c.l.bf16 %v181
    %v338 = vunpack.c.h.bf16 %v181
    %v339 = vunpack.c.l.bf16 %v182
    %v340 = vunpack.c.h.bf16 %v182
    %v341 = vunpack.c.l.bf16 %v183
    %v342 = vunpack.c.h.bf16 %v183
    %v343 = vunpack.c.l.bf16 %v184
    %v344 = vunpack.c.h.bf16 %v184
    %v345 = vunpack.c.l.bf16 %v185
    %v346 = vunpack.c.h.bf16 %v185
    %v347 = vunpack.c.l.bf16 %v186
    %v348 = vunpack.c.h.bf16 %v186
    %v349 = vunpack.c.l.bf16 %v187
    %v350 = vunpack.c.h.bf16 %v187
    %v351 = vunpack.c.l.bf16 %v188
    %v352 = vunpack.c.h.bf16 %v188
    %v353 = vunpack.c.l.bf16 %v189
    %v354 = vunpack.c.h.bf16 %v189
    %v355 = vunpack.c.l.bf16 %v190
    %v356 = vunpack.c.h.bf16 %v190
    %v357 = vunpack.c.l.bf16 %v191
    %v358 = vunpack.c.h.bf16 %v191
    %v359 = vunpack.c.l.bf16 %v192
    %v360 = vunpack.c.h.bf16 %v192
    %v361 = vunpack.c.l.bf16 %v193
    %v362 = vunpack.c.h.bf16 %v193
    %v363 = vunpack.c.l.bf16 %v194
    %v364 = vunpack.c.h.bf16 %v194
    %v365 = vunpack.c.l.bf16 %v195
    %v366 = vunpack.c.h.bf16 %v195
    %v367 = vunpack.c.l.bf16 %v196
    %v368 = vunpack.c.h.bf16 %v196
    %v369 = vunpack.c.l.bf16 %v197
    %v370 = vunpack.c.h.bf16 %v197
    %v371 = vunpack.c.l.bf16 %v198
    %v372 = vunpack.c.h.bf16 %v198
    %v373 = vunpack.c.l.bf16 %v199
    %v374 = vunpack.c.h.bf16 %v199
    %v375 = vunpack.c.l.bf16 %v200
    %v376 = vunpack.c.h.bf16 %v200
    %v377 = vunpack.c.l.bf16 %v201
    %v378 = vunpack.c.h.bf16 %v201
    %v379 = vunpack.c.l.bf16 %v202
    %v380 = vunpack.c.h.bf16 %v202
    %v381 = vunpack.c.l.bf16 %v203
    %v382 = vunpack.c.h.bf16 %v203
    %v383 = vunpack.c.l.bf16 %v204
    %v384 = vunpack.c.h.bf16 %v204
    %v385 = vunpack.c.l.bf16 %v205
    %v386 = vunpack.c.h.bf16 %v205
    %v387 = vunpack.c.l.bf16 %v206
    %v388 = vunpack.c.h.bf16 %v206
    %v389 = vunpack.c.l.bf16 %v207
    %v390 = vunpack.c.h.bf16 %v207
    %v391 = vunpack.c.l.bf16 %v208
    %v392 = vunpack.c.h.bf16 %v208
    %v393 = vunpack.c.l.bf16 %v209
    %v394 = vunpack.c.h.bf16 %v209
    %v395 = vunpack.c.l.bf16 %v210
    %v396 = vunpack.c.h.bf16 %v210
    %v397 = vunpack.c.l.bf16 %v211
    %v398 = vunpack.c.h.bf16 %v211
    %v399 = vunpack.c.l.bf16 %v212
    %v400 = vunpack.c.h.bf16 %v212
    %v401 = vunpack.c.l.bf16 %v213
    %v402 = vunpack.c.h.bf16 %v213
    %v403 = vunpack.c.l.bf16 %v214
    %v404 = vunpack.c.h.bf16 %v214
    %v405 = vunpack.c.l.bf16 %v215
    %v406 = vunpack.c.h.bf16 %v215
    %v407 = vunpack.c.l.bf16 %v216
    %v408 = vunpack.c.h.bf16 %v216
    %v409 = vunpack.c.l.bf16 %v217
    %v410 = vunpack.c.h.bf16 %v217
    %v411 = vunpack.c.l.bf16 %v218
    %v412 = vunpack.c.h.bf16 %v218
    %v413 = vunpack.c.l.bf16 %v219
    %v414 = vunpack.c.h.bf16 %v219
    %v415 = vunpack.c.l.bf16 %v220
    %v416 = vunpack.c.h.bf16 %v220
    %v417 = vunpack.c.l.bf16 %v221
    %v418 = vunpack.c.h.bf16 %v221
    %v419 = vunpack.c.l.bf16 %v222
    %v420 = vunpack.c.h.bf16 %v222
    %v421 = vunpack.c.l.bf16 %v223
    %v422 = vunpack.c.h.bf16 %v223
    %v423 = vunpack.c.l.bf16 %v224
    %v424 = vunpack.c.h.bf16 %v224
    %v425 = vunpack.c.l.bf16 %v225
    %v426 = vunpack.c.h.bf16 %v225
    %v427 = vunpack.c.l.bf16 %v226
    %v428 = vunpack.c.h.bf16 %v226
    %v429 = vunpack.c.l.bf16 %v227
    %v430 = vunpack.c.h.bf16 %v227
    %v431 = vunpack.c.l.bf16 %v228
    %v432 = vunpack.c.h.bf16 %v228
    %v433 = vunpack.c.l.bf16 %v229
    %v434 = vunpack.c.h.bf16 %v229
    %v435 = vunpack.c.l.bf16 %v230
    %v436 = vunpack.c.h.bf16 %v230
    %v437 = vunpack.c.l.bf16 %v231
    %v438 = vunpack.c.h.bf16 %v231
    %v439 = vunpack.c.l.bf16 %v232
    %v440 = vunpack.c.h.bf16 %v232
    %v441 = vunpack.c.l.bf16 %v233
    %v442 = vunpack.c.h.bf16 %v233
    %v443 = vunpack.c.l.bf16 %v234
    %v444 = vunpack.c.h.bf16 %v234
    %v445 = vunpack.c.l.bf16 %v235
    %v446 = vunpack.c.h.bf16 %v235
    %v447 = vunpack.c.l.bf16 %v236
    %v448 = vunpack.c.h.bf16 %v236
    %v449 = vunpack.c.l.bf16 %v237
    %v450 = vunpack.c.h.bf16 %v237
    %v451 = vunpack.c.l.bf16 %v238
    %v452 = vunpack.c.h.bf16 %v238
    %v453 = vunpack.c.l.bf16 %v239
    %v454 = vunpack.c.h.bf16 %v239
    %v455 = vunpack.c.l.bf16 %v240
    %v456 = vunpack.c.h.bf16 %v240
    %v457 = vunpack.c.l.bf16 %v241
    %v458 = vunpack.c.h.bf16 %v241
    %v459 = vunpack.c.l.bf16 %v242
    %v460 = vunpack.c.h.bf16 %v242
    %v461 = vunpack.c.l.bf16 %v243
    %v462 = vunpack.c.h.bf16 %v243
    %v463 = vunpack.c.l.bf16 %v244
    %v464 = vunpack.c.h.bf16 %v244
    %vm465 = vcmask 457728
    %v467 = vsel %vm465, %v248, 0
    %v470 = vsel %vm465, %v252, 0
    %v473 = vsel %vm465, %v256, 0
    %v476 = vsel %vm465, %v260, 0
    %v479 = vsel %vm465, %v264, 0
    %v482 = vsel %vm465, %v268, 0
    %v485 = vsel %vm465, %v272, 0
    %v488 = vsel %vm465, %v276, 0
    %v491 = vsel %vm465, %v280, 0
    %v494 = vsel %vm465, %v284, 0
    %v497 = vsel %vm465, %v288, 0
    %v500 = vsel %vm465, %v292, 0
    %v503 = vsel %vm465, %v296, 0
    %v506 = vsel %vm465, %v300, 0
    %v509 = vsel %vm465, %v304, 0
    %v512 = vsel %vm465, %v308, 0
    %v515 = vsel %vm465, %v312, 0
    %v518 = vsel %vm465, %v316, 0
    %v521 = vsel %vm465, %v320, 0
    %v524 = vsel %vm465, %v324, 0
    %v527 = vsel %vm465, %v328, 0
    %v530 = vsel %vm465, %v332, 0
    %v533 = vsel %vm465, %v336, 0
    %v536 = vsel %vm465, %v340, 0
    %v539 = vsel %vm465, %v344, 0
    %v542 = vsel %vm465, %v348, 0
    %v545 = vsel %vm465, %v352, 0
    %v548 = vsel %vm465, %v356, 0
    %v551 = vsel %vm465, %v360, 0
    %v554 = vsel %vm465, %v364, 0
    %v557 = vsel %vm465, %v368, 0
    %v560 = vsel %vm465, %v372, 0
    %v563 = vsel %vm465, %v376, 0
    %v566 = vsel %vm465, %v380, 0
    %v569 = vsel %vm465, %v384, 0
    %v572 = vsel %vm465, %v388, 0
    %v575 = vsel %vm465, %v392, 0
    %v578 = vsel %vm465, %v396, 0
    %v581 = vsel %vm465, %v400, 0
    %v584 = vsel %vm465, %v404, 0
    %v587 = vsel %vm465, %v408, 0
    %v590 = vsel %vm465, %v412, 0
    %v593 = vsel %vm465, %v416, 0
    %v596 = vsel %vm465, %v420, 0
    %v599 = vsel %vm465, %v424, 0
    %v602 = vsel %vm465, %v428, 0
    %v605 = vsel %vm465, %v432, 0
    %v608 = vsel %vm465, %v436, 0
    %v611 = vsel %vm465, %v440, 0
    %v614 = vsel %vm465, %v444, 0
    %v617 = vsel %vm465, %v448, 0
    %v620 = vsel %vm465, %v452, 0
    %v623 = vsel %vm465, %v456, 0
    %v626 = vsel %vm465, %v460, 0
    %v629 = vsel %vm465, %v464, 0
    %631 = vmatprep.subr.mxu0 0.0
    %632 = vmatpush1.msra.mxu0 %v80
    %633 = vmatprep.subr.mxu0 0.0
    %634 = vmatpush1.msra.mxu0 %v81
    %635 = vmatprep.subr.mxu0 0.0
    %636 = vmatpush1.msra.mxu0 %v82
    %637 = vmatprep.subr.mxu0 0.0
    %638 = vmatpush1.msra.mxu0 %v83
    %639 = vmatprep.subr.mxu0 0.0
    %640 = vmatpush1.msra.mxu0 %v84
    %641 = vmatprep.subr.mxu0 0.0
    %642 = vmatpush1.msra.mxu0 %v85
    %643 = vmatprep.subr.mxu0 0.0
    %644 = vmatpush1.msra.mxu0 %v86
    %645 = vmatprep.subr.mxu0 0.0
    %646 = vmatpush1.msra.mxu0 %v87
    %647 = vmatprep.subr.mxu0 0.0
    %648 = vmatpush1.msra.mxu0 %v88
    %649 = vmatprep.subr.mxu0 0.0
    %650 = vmatpush1.msra.mxu0 %v89
    %651 = vmatprep.subr.mxu0 0.0
    %652 = vmatpush1.msra.mxu0 %v90
    %653 = vmatprep.subr.mxu0 0.0
    %654 = vmatpush1.msra.mxu0 %v91
    %655 = vmatprep.subr.mxu0 0.0
    %656 = vmatpush1.msra.mxu0 %v92
    %657 = vmatprep.subr.mxu0 0.0
    %658 = vmatpush1.msra.mxu0 %v93
    %659 = vmatprep.subr.mxu0 0.0
    %660 = vmatpush1.msra.mxu0 %v94
    %661 = vmatprep.subr.mxu0 0.0
    %662 = vmatpush1.msra.mxu0 %v95
    %663 = vmatprep.subr.mxu0 0.0
    %664 = vmatpush1.msra.mxu0 %v96
    %665 = vmatprep.subr.mxu0 0.0
    %666 = vmatpush1.msra.mxu0 %v97
    %667 = vmatprep.subr.mxu0 0.0
    %668 = vmatpush1.msra.mxu0 %v98
    %669 = vmatprep.subr.mxu0 0.0
    %670 = vmatpush1.msra.mxu0 %v99
    %671 = vmatprep.subr.mxu0 0.0
    %672 = vmatpush1.msra.mxu0 %v100
    %673 = vmatprep.subr.mxu0 0.0
    %674 = vmatpush1.msra.mxu0 %v101
    %675 = vmatprep.subr.mxu0 0.0
    %676 = vmatpush1.msra.mxu0 %v102
    %677 = vmatprep.subr.mxu0 0.0
    %678 = vmatpush1.msra.mxu0 %v103
    %679 = vmatprep.subr.mxu0 0.0
    %680 = vmatpush1.msra.mxu0 %v104
    %681 = vmatprep.subr.mxu0 0.0
    %682 = vmatpush1.msra.mxu0 %v105
    %683 = vmatprep.subr.mxu0 0.0
    %684 = vmatpush1.msra.mxu0 %v106
    %685 = vmatprep.subr.mxu0 0.0
    %686 = vmatpush1.msra.mxu0 %v107
    %687 = vmatprep.subr.mxu0 0.0
    %688 = vmatpush1.msra.mxu0 %v108
    %689 = vmatprep.subr.mxu0 0.0
    %690 = vmatpush1.msra.mxu0 %v109
    %691 = vmatprep.subr.mxu0 0.0
    %692 = vmatpush1.msra.mxu0 %v110
    %693 = vmatprep.subr.mxu0 0.0
    %694 = vmatpush1.msra.mxu0 %v111
    %695 = vmatprep.mubr.f32.mxu0 %v246
    %696 = vmatmul.mubr.f32.gmra.mrb[0].mxu0 %v245
    %v697 = vpop.f32.mrb[0].mxu0
    %v698 = vadd.f32 0.0, %v697
    %v699 = vpop.f32.mrb[0].mxu0
    %700 = vmatprep.mubr.f32.mxu0 %v250
    %701 = vmatmul.mubr.f32.gmra.mrb[0].mxu0 %v249
    %v702 = vpop.f32.mrb[0].mxu0
    %v703 = vadd.f32 0.0, %v702
    %v704 = vpop.f32.mrb[0].mxu0
    %705 = vmatprep.mubr.f32.mxu0 %v254
    %706 = vmatmul.mubr.f32.gmra.mrb[0].mxu0 %v253
    %v707 = vpop.f32.mrb[0].mxu0
    %v708 = vadd.f32 0.0, %v707
    %v709 = vpop.f32.mrb[0].mxu0
    %710 = vmatprep.mubr.f32.mxu0 %v258
    %711 = vmatmul.mubr.f32.gmra.mrb[0].mxu0 %v257
    %v712 = vpop.f32.mrb[0].mxu0
    %v713 = vadd.f32 0.0, %v712
    %v714 = vpop.f32.mrb[0].mxu0
    %715 = vmatprep.mubr.f32.mxu0 %v262
    %716 = vmatmul.mubr.f32.gmra.mrb[0].mxu0 %v261
    %v717 = vpop.f32.mrb[0].mxu0
    %v718 = vadd.f32 0.0, %v717
    %v719 = vpop.f32.mrb[0].mxu0
    %720 = vmatprep.mubr.f32.mxu0 %v266
    %721 = vmatmul.mubr.f32.gmra.mrb[0].mxu0 %v265
    %v722 = vpop.f32.mrb[0].mxu0
    %v723 = vadd.f32 0.0, %v722
    %v724 = vpop.f32.mrb[0].mxu0
    %725 = vmatprep.mubr.f32.mxu0 %v270
    %726 = vmatmul.mubr.f32.gmra.mrb[0].mxu0 %v269
    %v727 = vpop.f32.mrb[0].mxu0
    %v728 = vadd.f32 0.0, %v727
    %v729 = vpop.f32.mrb[0].mxu0
    %730 = vmatprep.mubr.f32.mxu0 %v274
    %731 = vmatmul.mubr.f32.gmra.mrb[0].mxu0 %v273
    %v732 = vpop.f32.mrb[0].mxu0
    %v733 = vadd.f32 0.0, %v732
    %v734 = vpop.f32.mrb[0].mxu0
    %735 = vmatprep.mubr.f32.mxu0 %v278
    %736 = vmatmul.mubr.f32.gmra.mrb[0].mxu0 %v277
    %v737 = vpop.f32.mrb[0].mxu0
    %v738 = vadd.f32 0.0, %v737
    %v739 = vpop.f32.mrb[0].mxu0
    %740 = vmatprep.mubr.f32.mxu0 %v282
    %741 = vmatmul.mubr.f32.gmra.mrb[0].mxu0 %v281
    %v742 = vpop.f32.mrb[0].mxu0
    %v743 = vadd.f32 0.0, %v742
    %v744 = vpop.f32.mrb[0].mxu0
    %745 = vmatprep.mubr.f32.mxu0 %v286
    %746 = vmatmul.mubr.f32.gmra.mrb[0].mxu0 %v285
    %v747 = vpop.f32.mrb[0].mxu0
    %v748 = vadd.f32 0.0, %v747
    %v749 = vpop.f32.mrb[0].mxu0
    %750 = vmatprep.mubr.f32.mxu0 %v290
    %751 = vmatmul.mubr.f32.gmra.mrb[0].mxu0 %v289
    %v752 = vpop.f32.mrb[0].mxu0
    %v753 = vadd.f32 0.0, %v752
    %v754 = vpop.f32.mrb[0].mxu0
    %755 = vmatprep.mubr.f32.mxu0 %v294
    %756 = vmatmul.mubr.f32.gmra.mrb[0].mxu0 %v293
    %v757 = vpop.f32.mrb[0].mxu0
    %v758 = vadd.f32 0.0, %v757
    %v759 = vpop.f32.mrb[0].mxu0
    %760 = vmatprep.mubr.f32.mxu0 %v298
    %761 = vmatmul.mubr.f32.gmra.mrb[0].mxu0 %v297
    %v762 = vpop.f32.mrb[0].mxu0
    %v763 = vadd.f32 0.0, %v762
    %v764 = vpop.f32.mrb[0].mxu0
    %765 = vmatprep.mubr.f32.mxu0 %v302
    %766 = vmatmul.mubr.f32.gmra.mrb[0].mxu0 %v301
    %v767 = vpop.f32.mrb[0].mxu0
    %v768 = vadd.f32 0.0, %v767
    %v769 = vpop.f32.mrb[0].mxu0
    %770 = vmatprep.mubr.f32.mxu0 %v306
    %771 = vmatmul.mubr.f32.gmra.mrb[0].mxu0 %v305
    %v772 = vpop.f32.mrb[0].mxu0
    %v773 = vadd.f32 0.0, %v772
    %v774 = vpop.f32.mrb[0].mxu0
    %775 = vmatprep.mubr.f32.mxu0 %v310
    %776 = vmatmul.mubr.f32.gmra.mrb[0].mxu0 %v309
    %v777 = vpop.f32.mrb[0].mxu0
    %v778 = vadd.f32 0.0, %v777
    %v779 = vpop.f32.mrb[0].mxu0
    %780 = vmatprep.mubr.f32.mxu0 %v314
    %781 = vmatmul.mubr.f32.gmra.mrb[0].mxu0 %v313
    %v782 = vpop.f32.mrb[0].mxu0
    %v783 = vadd.f32 0.0, %v782
    %v784 = vpop.f32.mrb[0].mxu0
    %785 = vmatprep.mubr.f32.mxu0 %v318
    %786 = vmatmul.mubr.f32.gmra.mrb[0].mxu0 %v317
    %v787 = vpop.f32.mrb[0].mxu0
    %v788 = vadd.f32 0.0, %v787
    %v789 = vpop.f32.mrb[0].mxu0
    %790 = vmatprep.mubr.f32.mxu0 %v322
    %791 = vmatmul.mubr.f32.gmra.mrb[0].mxu0 %v321
    %v792 = vpop.f32.mrb[0].mxu0
    %v793 = vadd.f32 0.0, %v792
    %v794 = vpop.f32.mrb[0].mxu0
    %795 = vmatprep.mubr.f32.mxu0 %v326
    %796 = vmatmul.mubr.f32.gmra.mrb[0].mxu0 %v325
    %v797 = vpop.f32.mrb[0].mxu0
    %v798 = vadd.f32 0.0, %v797
    %v799 = vpop.f32.mrb[0].mxu0
    %800 = vmatprep.mubr.f32.mxu0 %v330
    %801 = vmatmul.mubr.f32.gmra.mrb[0].mxu0 %v329
    %v802 = vpop.f32.mrb[0].mxu0
    %v803 = vadd.f32 0.0, %v802
    %v804 = vpop.f32.mrb[0].mxu0
    %805 = vmatprep.mubr.f32.mxu0 %v334
    %806 = vmatmul.mubr.f32.gmra.mrb[0].mxu0 %v333
    %v807 = vpop.f32.mrb[0].mxu0
    %v808 = vadd.f32 0.0, %v807
    %v809 = vpop.f32.mrb[0].mxu0
    %810 = vmatprep.mubr.f32.mxu0 %v338
    %811 = vmatmul.mubr.f32.gmra.mrb[0].mxu0 %v337
    %v812 = vpop.f32.mrb[0].mxu0
    %v813 = vadd.f32 0.0, %v812
    %v814 = vpop.f32.mrb[0].mxu0
    %815 = vmatprep.mubr.f32.mxu0 %v342
    %816 = vmatmul.mubr.f32.gmra.mrb[0].mxu0 %v341
    %v817 = vpop.f32.mrb[0].mxu0
    %v818 = vadd.f32 0.0, %v817
    %v819 = vpop.f32.mrb[0].mxu0
    %820 = vmatprep.mubr.f32.mxu0 %v346
    %821 = vmatmul.mubr.f32.gmra.mrb[0].mxu0 %v345
    %v822 = vpop.f32.mrb[0].mxu0
    %v823 = vadd.f32 0.0, %v822
    %v824 = vpop.f32.mrb[0].mxu0
    %825 = vmatprep.mubr.f32.mxu0 %v350
    %826 = vmatmul.mubr.f32.gmra.mrb[0].mxu0 %v349
    %v827 = vpop.f32.mrb[0].mxu0
    %v828 = vadd.f32 0.0, %v827
    %v829 = vpop.f32.mrb[0].mxu0
    %830 = vmatprep.mubr.f32.mxu0 %v354
    %831 = vmatmul.mubr.f32.gmra.mrb[0].mxu0 %v353
    %v832 = vpop.f32.mrb[0].mxu0
    %v833 = vadd.f32 0.0, %v832
    %v834 = vpop.f32.mrb[0].mxu0
    %835 = vmatprep.mubr.f32.mxu0 %v358
    %836 = vmatmul.mubr.f32.gmra.mrb[0].mxu0 %v357
    %v837 = vpop.f32.mrb[0].mxu0
    %v838 = vadd.f32 0.0, %v837
    %v839 = vpop.f32.mrb[0].mxu0
    %840 = vmatprep.mubr.f32.mxu0 %v362
    %841 = vmatmul.mubr.f32.gmra.mrb[0].mxu0 %v361
    %v842 = vpop.f32.mrb[0].mxu0
    %v843 = vadd.f32 0.0, %v842
    %v844 = vpop.f32.mrb[0].mxu0
    %845 = vmatprep.mubr.f32.mxu0 %v366
    %846 = vmatmul.mubr.f32.gmra.mrb[0].mxu0 %v365
    %v847 = vpop.f32.mrb[0].mxu0
    %v848 = vadd.f32 0.0, %v847
    %v849 = vpop.f32.mrb[0].mxu0
    %850 = vmatprep.mubr.f32.mxu0 %v370
    %851 = vmatmul.mubr.f32.gmra.mrb[0].mxu0 %v369
    %v852 = vpop.f32.mrb[0].mxu0
    %v853 = vadd.f32 0.0, %v852
    %v854 = vpop.f32.mrb[0].mxu0
    %855 = vmatprep.mubr.f32.mxu0 %v374
    %856 = vmatmul.mubr.f32.gmra.mrb[0].mxu0 %v373
    %v857 = vpop.f32.mrb[0].mxu0
    %v858 = vadd.f32 0.0, %v857
    %v859 = vpop.f32.mrb[0].mxu0
    %860 = vmatprep.mubr.f32.mxu0 %v378
    %861 = vmatmul.mubr.f32.gmra.mrb[0].mxu0 %v377
    %v862 = vpop.f32.mrb[0].mxu0
    %v863 = vadd.f32 0.0, %v862
    %v864 = vpop.f32.mrb[0].mxu0
    %865 = vmatprep.mubr.f32.mxu0 %v382
    %866 = vmatmul.mubr.f32.gmra.mrb[0].mxu0 %v381
    %v867 = vpop.f32.mrb[0].mxu0
    %v868 = vadd.f32 0.0, %v867
    %v869 = vpop.f32.mrb[0].mxu0
    %870 = vmatprep.mubr.f32.mxu0 %v386
    %871 = vmatmul.mubr.f32.gmra.mrb[0].mxu0 %v385
    %v872 = vpop.f32.mrb[0].mxu0
    %v873 = vadd.f32 0.0, %v872
    %v874 = vpop.f32.mrb[0].mxu0
    %875 = vmatprep.mubr.f32.mxu0 %v390
    %876 = vmatmul.mubr.f32.gmra.mrb[0].mxu0 %v389
    %v877 = vpop.f32.mrb[0].mxu0
    %v878 = vadd.f32 0.0, %v877
    %v879 = vpop.f32.mrb[0].mxu0
    %880 = vmatprep.mubr.f32.mxu0 %v394
    %881 = vmatmul.mubr.f32.gmra.mrb[0].mxu0 %v393
    %v882 = vpop.f32.mrb[0].mxu0
    %v883 = vadd.f32 0.0, %v882
    %v884 = vpop.f32.mrb[0].mxu0
    %885 = vmatprep.mubr.f32.mxu0 %v398
    %886 = vmatmul.mubr.f32.gmra.mrb[0].mxu0 %v397
    %v887 = vpop.f32.mrb[0].mxu0
    %v888 = vadd.f32 0.0, %v887
    %v889 = vpop.f32.mrb[0].mxu0
    %890 = vmatprep.mubr.f32.mxu0 %v402
    %891 = vmatmul.mubr.f32.gmra.mrb[0].mxu0 %v401
    %v892 = vpop.f32.mrb[0].mxu0
    %v893 = vadd.f32 0.0, %v892
    %v894 = vpop.f32.mrb[0].mxu0
    %895 = vmatprep.mubr.f32.mxu0 %v406
    %896 = vmatmul.mubr.f32.gmra.mrb[0].mxu0 %v405
    %v897 = vpop.f32.mrb[0].mxu0
    %v898 = vadd.f32 0.0, %v897
    %v899 = vpop.f32.mrb[0].mxu0
    %900 = vmatprep.mubr.f32.mxu0 %v410
    %901 = vmatmul.mubr.f32.gmra.mrb[0].mxu0 %v409
    %v902 = vpop.f32.mrb[0].mxu0
    %v903 = vadd.f32 0.0, %v902
    %v904 = vpop.f32.mrb[0].mxu0
    %905 = vmatprep.mubr.f32.mxu0 %v414
    %906 = vmatmul.mubr.f32.gmra.mrb[0].mxu0 %v413
    %v907 = vpop.f32.mrb[0].mxu0
    %v908 = vadd.f32 0.0, %v907
    %v909 = vpop.f32.mrb[0].mxu0
    %910 = vmatprep.mubr.f32.mxu0 %v418
    %911 = vmatmul.mubr.f32.gmra.mrb[0].mxu0 %v417
    %v912 = vpop.f32.mrb[0].mxu0
    %v913 = vadd.f32 0.0, %v912
    %v914 = vpop.f32.mrb[0].mxu0
    %915 = vmatprep.mubr.f32.mxu0 %v422
    %916 = vmatmul.mubr.f32.gmra.mrb[0].mxu0 %v421
    %v917 = vpop.f32.mrb[0].mxu0
    %v918 = vadd.f32 0.0, %v917
    %v919 = vpop.f32.mrb[0].mxu0
    %920 = vmatprep.mubr.f32.mxu0 %v426
    %921 = vmatmul.mubr.f32.gmra.mrb[0].mxu0 %v425
    %v922 = vpop.f32.mrb[0].mxu0
    %v923 = vadd.f32 0.0, %v922
    %v924 = vpop.f32.mrb[0].mxu0
    %925 = vmatprep.mubr.f32.mxu0 %v430
    %926 = vmatmul.mubr.f32.gmra.mrb[0].mxu0 %v429
    %v927 = vpop.f32.mrb[0].mxu0
    %v928 = vadd.f32 0.0, %v927
    %v929 = vpop.f32.mrb[0].mxu0
    %930 = vmatprep.mubr.f32.mxu0 %v434
    %931 = vmatmul.mubr.f32.gmra.mrb[0].mxu0 %v433
    %v932 = vpop.f32.mrb[0].mxu0
    %v933 = vadd.f32 0.0, %v932
    %v934 = vpop.f32.mrb[0].mxu0
    %935 = vmatprep.mubr.f32.mxu0 %v438
    %936 = vmatmul.mubr.f32.gmra.mrb[0].mxu0 %v437
    %v937 = vpop.f32.mrb[0].mxu0
    %v938 = vadd.f32 0.0, %v937
    %v939 = vpop.f32.mrb[0].mxu0
    %940 = vmatprep.mubr.f32.mxu0 %v442
    %941 = vmatmul.mubr.f32.gmra.mrb[0].mxu0 %v441
    %v942 = vpop.f32.mrb[0].mxu0
    %v943 = vadd.f32 0.0, %v942
    %v944 = vpop.f32.mrb[0].mxu0
    %945 = vmatprep.mubr.f32.mxu0 %v446
    %946 = vmatmul.mubr.f32.gmra.mrb[0].mxu0 %v445
    %v947 = vpop.f32.mrb[0].mxu0
    %v948 = vadd.f32 0.0, %v947
    %v949 = vpop.f32.mrb[0].mxu0
    %950 = vmatprep.mubr.f32.mxu0 %v450
    %951 = vmatmul.mubr.f32.gmra.mrb[0].mxu0 %v449
    %v952 = vpop.f32.mrb[0].mxu0
    %v953 = vadd.f32 0.0, %v952
    %v954 = vpop.f32.mrb[0].mxu0
    %955 = vmatprep.mubr.f32.mxu0 %v454
    %956 = vmatmul.mubr.f32.gmra.mrb[0].mxu0 %v453
    %v957 = vpop.f32.mrb[0].mxu0
    %v958 = vadd.f32 0.0, %v957
    %v959 = vpop.f32.mrb[0].mxu0
    %960 = vmatprep.mubr.f32.mxu0 %v458
    %961 = vmatmul.mubr.f32.gmra.mrb[0].mxu0 %v457
    %v962 = vpop.f32.mrb[0].mxu0
    %v963 = vadd.f32 0.0, %v962
    %v964 = vpop.f32.mrb[0].mxu0
    %965 = vmatprep.mubr.f32.mxu0 %v462
    %966 = vmatmul.mubr.f32.gmra.mrb[0].mxu0 %v461
    %v967 = vpop.f32.mrb[0].mxu0
    %v968 = vadd.f32 0.0, %v967
    %v969 = vpop.f32.mrb[0].mxu0
    %970 = vdwg.mxu0
    %971 = vmatprep.subr.mxu0 0.0
    %972 = vmatpush1.msra.mxu0 %v112
    %973 = vmatprep.subr.mxu0 0.0
    %974 = vmatpush1.msra.mxu0 %v113
    %975 = vmatprep.subr.mxu0 0.0
    %976 = vmatpush1.msra.mxu0 %v114
    %977 = vmatprep.subr.mxu0 0.0
    %978 = vmatpush1.msra.mxu0 %v115
    %979 = vmatprep.subr.mxu0 0.0
    %980 = vmatpush1.msra.mxu0 %v116
    %981 = vmatprep.subr.mxu0 0.0
    %982 = vmatpush1.msra.mxu0 %v117
    %983 = vmatprep.subr.mxu0 0.0
    %984 = vmatpush1.msra.mxu0 %v118
    %985 = vmatprep.subr.mxu0 0.0
    %986 = vmatpush1.msra.mxu0 %v119
    %987 = vmatprep.subr.mxu0 0.0
    %988 = vmatpush1.msra.mxu0 %v120
    %989 = vmatprep.subr.mxu0 0.0
    %990 = vmatpush1.msra.mxu0 %v121
    %991 = vmatprep.subr.mxu0 0.0
    %992 = vmatpush1.msra.mxu0 %v122
    %993 = vmatprep.subr.mxu0 0.0
    %994 = vmatpush1.msra.mxu0 %v123
    %995 = vmatprep.subr.mxu0 0.0
    %996 = vmatpush1.msra.mxu0 %v124
    %997 = vmatprep.subr.mxu0 0.0
    %998 = vmatpush1.msra.mxu0 %v125
    %999 = vmatprep.subr.mxu0 0.0
    %1000 = vmatpush1.msra.mxu0 %v126
    %1001 = vmatprep.subr.mxu0 0.0
    %1002 = vmatpush1.msra.mxu0 %v127
    %1003 = vmatprep.subr.mxu0 0.0
    %1004 = vmatpush1.msra.mxu0 %v128
    %1005 = vmatprep.subr.mxu0 0.0
    %1006 = vmatpush1.msra.mxu0 %v129
    %1007 = vmatprep.subr.mxu0 0.0
    %1008 = vmatpush1.msra.mxu0 %v130
    %1009 = vmatprep.subr.mxu0 0.0
    %1010 = vmatpush1.msra.mxu0 %v131
    %1011 = vmatprep.subr.mxu0 0.0
    %1012 = vmatpush1.msra.mxu0 %v132
    %1013 = vmatprep.subr.mxu0 0.0
    %1014 = vmatpush1.msra.mxu0 %v133
    %1015 = vmatprep.subr.mxu0 0.0
    %1016 = vmatpush1.msra.mxu0 %v134
    %1017 = vmatprep.subr.mxu0 0.0
    %1018 = vmatpush1.msra.mxu0 0.0
    %1019 = vmatprep.subr.mxu0 0.0
    %1020 = vmatpush1.msra.mxu0 0.0
    %1021 = vmatprep.subr.mxu0 0.0
    %1022 = vmatpush1.msra.mxu0 0.0
    %1023 = vmatprep.subr.mxu0 0.0
    %1024 = vmatpush1.msra.mxu0 0.0
    %1025 = vmatprep.subr.mxu0 0.0
    %1026 = vmatpush1.msra.mxu0 0.0
    %1027 = vmatprep.subr.mxu0 0.0
    %1028 = vmatpush1.msra.mxu0 0.0
    %1029 = vmatprep.subr.mxu0 0.0
    %1030 = vmatpush1.msra.mxu0 0.0
    %1031 = vmatprep.subr.mxu0 0.0
    %1032 = vmatpush1.msra.mxu0 0.0
    %1033 = vmatprep.subr.mxu0 0.0
    %1034 = vmatpush1.msra.mxu0 0.0
    %1035 = vmatprep.mubr.f32.mxu0 %v467
    %1036 = vmatmul.mubr.f32.gmra.mrb[0].mxu0 %v247
    %v1037 = vpop.f32.mrb[0].mxu0
    %v1038 = vadd.f32 %v698, %v1037
    %v1039 = vpop.f32.mrb[0].mxu0
    %1040 = vmatprep.mubr.f32.mxu0 %v470
    %1041 = vmatmul.mubr.f32.gmra.mrb[0].mxu0 %v251
    %v1042 = vpop.f32.mrb[0].mxu0
    %v1043 = vadd.f32 %v703, %v1042
    %v1044 = vpop.f32.mrb[0].mxu0
    %1045 = vmatprep.mubr.f32.mxu0 %v473
    %1046 = vmatmul.mubr.f32.gmra.mrb[0].mxu0 %v255
    %v1047 = vpop.f32.mrb[0].mxu0
    %v1048 = vadd.f32 %v708, %v1047
    %v1049 = vpop.f32.mrb[0].mxu0
    %1050 = vmatprep.mubr.f32.mxu0 %v476
    %1051 = vmatmul.mubr.f32.gmra.mrb[0].mxu0 %v259
    %v1052 = vpop.f32.mrb[0].mxu0
    %v1053 = vadd.f32 %v713, %v1052
    %v1054 = vpop.f32.mrb[0].mxu0
    %1055 = vmatprep.mubr.f32.mxu0 %v479
    %1056 = vmatmul.mubr.f32.gmra.mrb[0].mxu0 %v263
    %v1057 = vpop.f32.mrb[0].mxu0
    %v1058 = vadd.f32 %v718, %v1057
    %v1059 = vpop.f32.mrb[0].mxu0
    %1060 = vmatprep.mubr.f32.mxu0 %v482
    %1061 = vmatmul.mubr.f32.gmra.mrb[0].mxu0 %v267
    %v1062 = vpop.f32.mrb[0].mxu0
    %v1063 = vadd.f32 %v723, %v1062
    %v1064 = vpop.f32.mrb[0].mxu0
    %1065 = vmatprep.mubr.f32.mxu0 %v485
    %1066 = vmatmul.mubr.f32.gmra.mrb[0].mxu0 %v271
    %v1067 = vpop.f32.mrb[0].mxu0
    %v1068 = vadd.f32 %v728, %v1067
    %v1069 = vpop.f32.mrb[0].mxu0
    %1070 = vmatprep.mubr.f32.mxu0 %v488
    %1071 = vmatmul.mubr.f32.gmra.mrb[0].mxu0 %v275
    %v1072 = vpop.f32.mrb[0].mxu0
    %v1073 = vadd.f32 %v733, %v1072
    %v1074 = vpop.f32.mrb[0].mxu0
    %1075 = vmatprep.mubr.f32.mxu0 %v491
    %1076 = vmatmul.mubr.f32.gmra.mrb[0].mxu0 %v279
    %v1077 = vpop.f32.mrb[0].mxu0
    %v1078 = vadd.f32 %v738, %v1077
    %v1079 = vpop.f32.mrb[0].mxu0
    %1080 = vmatprep.mubr.f32.mxu0 %v494
    %1081 = vmatmul.mubr.f32.gmra.mrb[0].mxu0 %v283
    %v1082 = vpop.f32.mrb[0].mxu0
    %v1083 = vadd.f32 %v743, %v1082
    %v1084 = vpop.f32.mrb[0].mxu0
    %1085 = vmatprep.mubr.f32.mxu0 %v497
    %1086 = vmatmul.mubr.f32.gmra.mrb[0].mxu0 %v287
    %v1087 = vpop.f32.mrb[0].mxu0
    %v1088 = vadd.f32 %v748, %v1087
    %v1089 = vpop.f32.mrb[0].mxu0
    %1090 = vmatprep.mubr.f32.mxu0 %v500
    %1091 = vmatmul.mubr.f32.gmra.mrb[0].mxu0 %v291
    %v1092 = vpop.f32.mrb[0].mxu0
    %v1093 = vadd.f32 %v753, %v1092
    %v1094 = vpop.f32.mrb[0].mxu0
    %1095 = vmatprep.mubr.f32.mxu0 %v503
    %1096 = vmatmul.mubr.f32.gmra.mrb[0].mxu0 %v295
    %v1097 = vpop.f32.mrb[0].mxu0
    %v1098 = vadd.f32 %v758, %v1097
    %v1099 = vpop.f32.mrb[0].mxu0
    %1100 = vmatprep.mubr.f32.mxu0 %v506
    %1101 = vmatmul.mubr.f32.gmra.mrb[0].mxu0 %v299
    %v1102 = vpop.f32.mrb[0].mxu0
    %v1103 = vadd.f32 %v763, %v1102
    %v1104 = vpop.f32.mrb[0].mxu0
    %1105 = vmatprep.mubr.f32.mxu0 %v509
    %1106 = vmatmul.mubr.f32.gmra.mrb[0].mxu0 %v303
    %v1107 = vpop.f32.mrb[0].mxu0
    %v1108 = vadd.f32 %v768, %v1107
    %v1109 = vpop.f32.mrb[0].mxu0
    %1110 = vmatprep.mubr.f32.mxu0 %v512
    %1111 = vmatmul.mubr.f32.gmra.mrb[0].mxu0 %v307
    %v1112 = vpop.f32.mrb[0].mxu0
    %v1113 = vadd.f32 %v773, %v1112
    %v1114 = vpop.f32.mrb[0].mxu0
    %1115 = vmatprep.mubr.f32.mxu0 %v515
    %1116 = vmatmul.mubr.f32.gmra.mrb[0].mxu0 %v311
    %v1117 = vpop.f32.mrb[0].mxu0
    %v1118 = vadd.f32 %v778, %v1117
    %v1119 = vpop.f32.mrb[0].mxu0
    %1120 = vmatprep.mubr.f32.mxu0 %v518
    %1121 = vmatmul.mubr.f32.gmra.mrb[0].mxu0 %v315
    %v1122 = vpop.f32.mrb[0].mxu0
    %v1123 = vadd.f32 %v783, %v1122
    %v1124 = vpop.f32.mrb[0].mxu0
    %1125 = vmatprep.mubr.f32.mxu0 %v521
    %1126 = vmatmul.mubr.f32.gmra.mrb[0].mxu0 %v319
    %v1127 = vpop.f32.mrb[0].mxu0
    %v1128 = vadd.f32 %v788, %v1127
    %v1129 = vpop.f32.mrb[0].mxu0
    %1130 = vmatprep.mubr.f32.mxu0 %v524
    %1131 = vmatmul.mubr.f32.gmra.mrb[0].mxu0 %v323
    %v1132 = vpop.f32.mrb[0].mxu0
    %v1133 = vadd.f32 %v793, %v1132
    %v1134 = vpop.f32.mrb[0].mxu0
    %1135 = vmatprep.mubr.f32.mxu0 %v527
    %1136 = vmatmul.mubr.f32.gmra.mrb[0].mxu0 %v327
    %v1137 = vpop.f32.mrb[0].mxu0
    %v1138 = vadd.f32 %v798, %v1137
    %v1139 = vpop.f32.mrb[0].mxu0
    %1140 = vmatprep.mubr.f32.mxu0 %v530
    %1141 = vmatmul.mubr.f32.gmra.mrb[0].mxu0 %v331
    %v1142 = vpop.f32.mrb[0].mxu0
    %v1143 = vadd.f32 %v803, %v1142
    %v1144 = vpop.f32.mrb[0].mxu0
    %1145 = vmatprep.mubr.f32.mxu0 %v533
    %1146 = vmatmul.mubr.f32.gmra.mrb[0].mxu0 %v335
    %v1147 = vpop.f32.mrb[0].mxu0
    %v1148 = vadd.f32 %v808, %v1147
    %v1149 = vpop.f32.mrb[0].mxu0
    %1150 = vmatprep.mubr.f32.mxu0 %v536
    %1151 = vmatmul.mubr.f32.gmra.mrb[0].mxu0 %v339
    %v1152 = vpop.f32.mrb[0].mxu0
    %v1153 = vadd.f32 %v813, %v1152
    %v1154 = vpop.f32.mrb[0].mxu0
    %1155 = vmatprep.mubr.f32.mxu0 %v539
    %1156 = vmatmul.mubr.f32.gmra.mrb[0].mxu0 %v343
    %v1157 = vpop.f32.mrb[0].mxu0
    %v1158 = vadd.f32 %v818, %v1157
    %v1159 = vpop.f32.mrb[0].mxu0
    %1160 = vmatprep.mubr.f32.mxu0 %v542
    %1161 = vmatmul.mubr.f32.gmra.mrb[0].mxu0 %v347
    %v1162 = vpop.f32.mrb[0].mxu0
    %v1163 = vadd.f32 %v823, %v1162
    %v1164 = vpop.f32.mrb[0].mxu0
    %1165 = vmatprep.mubr.f32.mxu0 %v545
    %1166 = vmatmul.mubr.f32.gmra.mrb[0].mxu0 %v351
    %v1167 = vpop.f32.mrb[0].mxu0
    %v1168 = vadd.f32 %v828, %v1167
    %v1169 = vpop.f32.mrb[0].mxu0
    %1170 = vmatprep.mubr.f32.mxu0 %v548
    %1171 = vmatmul.mubr.f32.gmra.mrb[0].mxu0 %v355
    %v1172 = vpop.f32.mrb[0].mxu0
    %v1173 = vadd.f32 %v833, %v1172
    %v1174 = vpop.f32.mrb[0].mxu0
    %1175 = vmatprep.mubr.f32.mxu0 %v551
    %1176 = vmatmul.mubr.f32.gmra.mrb[0].mxu0 %v359
    %v1177 = vpop.f32.mrb[0].mxu0
    %v1178 = vadd.f32 %v838, %v1177
    %v1179 = vpop.f32.mrb[0].mxu0
    %1180 = vmatprep.mubr.f32.mxu0 %v554
    %1181 = vmatmul.mubr.f32.gmra.mrb[0].mxu0 %v363
    %v1182 = vpop.f32.mrb[0].mxu0
    %v1183 = vadd.f32 %v843, %v1182
    %v1184 = vpop.f32.mrb[0].mxu0
    %1185 = vmatprep.mubr.f32.mxu0 %v557
    %1186 = vmatmul.mubr.f32.gmra.mrb[0].mxu0 %v367
    %v1187 = vpop.f32.mrb[0].mxu0
    %v1188 = vadd.f32 %v848, %v1187
    %v1189 = vpop.f32.mrb[0].mxu0
    %1190 = vmatprep.mubr.f32.mxu0 %v560
    %1191 = vmatmul.mubr.f32.gmra.mrb[0].mxu0 %v371
    %v1192 = vpop.f32.mrb[0].mxu0
    %v1193 = vadd.f32 %v853, %v1192
    %v1194 = vpop.f32.mrb[0].mxu0
    %1195 = vmatprep.mubr.f32.mxu0 %v563
    %1196 = vmatmul.mubr.f32.gmra.mrb[0].mxu0 %v375
    %v1197 = vpop.f32.mrb[0].mxu0
    %v1198 = vadd.f32 %v858, %v1197
    %v1199 = vpop.f32.mrb[0].mxu0
    %1200 = vmatprep.mubr.f32.mxu0 %v566
    %1201 = vmatmul.mubr.f32.gmra.mrb[0].mxu0 %v379
    %v1202 = vpop.f32.mrb[0].mxu0
    %v1203 = vadd.f32 %v863, %v1202
    %v1204 = vpop.f32.mrb[0].mxu0
    %1205 = vmatprep.mubr.f32.mxu0 %v569
    %1206 = vmatmul.mubr.f32.gmra.mrb[0].mxu0 %v383
    %v1207 = vpop.f32.mrb[0].mxu0
    %v1208 = vadd.f32 %v868, %v1207
    %v1209 = vpop.f32.mrb[0].mxu0
    %1210 = vmatprep.mubr.f32.mxu0 %v572
    %1211 = vmatmul.mubr.f32.gmra.mrb[0].mxu0 %v387
    %v1212 = vpop.f32.mrb[0].mxu0
    %v1213 = vadd.f32 %v873, %v1212
    %v1214 = vpop.f32.mrb[0].mxu0
    %1215 = vmatprep.mubr.f32.mxu0 %v575
    %1216 = vmatmul.mubr.f32.gmra.mrb[0].mxu0 %v391
    %v1217 = vpop.f32.mrb[0].mxu0
    %v1218 = vadd.f32 %v878, %v1217
    %v1219 = vpop.f32.mrb[0].mxu0
    %1220 = vmatprep.mubr.f32.mxu0 %v578
    %1221 = vmatmul.mubr.f32.gmra.mrb[0].mxu0 %v395
    %v1222 = vpop.f32.mrb[0].mxu0
    %v1223 = vadd.f32 %v883, %v1222
    %v1224 = vpop.f32.mrb[0].mxu0
    %1225 = vmatprep.mubr.f32.mxu0 %v581
    %1226 = vmatmul.mubr.f32.gmra.mrb[0].mxu0 %v399
    %v1227 = vpop.f32.mrb[0].mxu0
    %v1228 = vadd.f32 %v888, %v1227
    %v1229 = vpop.f32.mrb[0].mxu0
    %1230 = vmatprep.mubr.f32.mxu0 %v584
    %1231 = vmatmul.mubr.f32.gmra.mrb[0].mxu0 %v403
    %v1232 = vpop.f32.mrb[0].mxu0
    %v1233 = vadd.f32 %v893, %v1232
    %v1234 = vpop.f32.mrb[0].mxu0
    %1235 = vmatprep.mubr.f32.mxu0 %v587
    %1236 = vmatmul.mubr.f32.gmra.mrb[0].mxu0 %v407
    %v1237 = vpop.f32.mrb[0].mxu0
    %v1238 = vadd.f32 %v898, %v1237
    %v1239 = vpop.f32.mrb[0].mxu0
    %1240 = vmatprep.mubr.f32.mxu0 %v590
    %1241 = vmatmul.mubr.f32.gmra.mrb[0].mxu0 %v411
    %v1242 = vpop.f32.mrb[0].mxu0
    %v1243 = vadd.f32 %v903, %v1242
    %v1244 = vpop.f32.mrb[0].mxu0
    %1245 = vmatprep.mubr.f32.mxu0 %v593
    %1246 = vmatmul.mubr.f32.gmra.mrb[0].mxu0 %v415
    %v1247 = vpop.f32.mrb[0].mxu0
    %v1248 = vadd.f32 %v908, %v1247
    %v1249 = vpop.f32.mrb[0].mxu0
    %1250 = vmatprep.mubr.f32.mxu0 %v596
    %1251 = vmatmul.mubr.f32.gmra.mrb[0].mxu0 %v419
    %v1252 = vpop.f32.mrb[0].mxu0
    %v1253 = vadd.f32 %v913, %v1252
    %v1254 = vpop.f32.mrb[0].mxu0
    %1255 = vmatprep.mubr.f32.mxu0 %v599
    %1256 = vmatmul.mubr.f32.gmra.mrb[0].mxu0 %v423
    %v1257 = vpop.f32.mrb[0].mxu0
    %v1258 = vadd.f32 %v918, %v1257
    %v1259 = vpop.f32.mrb[0].mxu0
    %1260 = vmatprep.mubr.f32.mxu0 %v602
    %1261 = vmatmul.mubr.f32.gmra.mrb[0].mxu0 %v427
    %v1262 = vpop.f32.mrb[0].mxu0
    %v1263 = vadd.f32 %v923, %v1262
    %v1264 = vpop.f32.mrb[0].mxu0
    %1265 = vmatprep.mubr.f32.mxu0 %v605
    %1266 = vmatmul.mubr.f32.gmra.mrb[0].mxu0 %v431
    %v1267 = vpop.f32.mrb[0].mxu0
    %v1268 = vadd.f32 %v928, %v1267
    %v1269 = vpop.f32.mrb[0].mxu0
    %1270 = vmatprep.mubr.f32.mxu0 %v608
    %1271 = vmatmul.mubr.f32.gmra.mrb[0].mxu0 %v435
    %v1272 = vpop.f32.mrb[0].mxu0
    %v1273 = vadd.f32 %v933, %v1272
    %v1274 = vpop.f32.mrb[0].mxu0
    %1275 = vmatprep.mubr.f32.mxu0 %v611
    %1276 = vmatmul.mubr.f32.gmra.mrb[0].mxu0 %v439
    %v1277 = vpop.f32.mrb[0].mxu0
    %v1278 = vadd.f32 %v938, %v1277
    %v1279 = vpop.f32.mrb[0].mxu0
    %1280 = vmatprep.mubr.f32.mxu0 %v614
    %1281 = vmatmul.mubr.f32.gmra.mrb[0].mxu0 %v443
    %v1282 = vpop.f32.mrb[0].mxu0
    %v1283 = vadd.f32 %v943, %v1282
    %v1284 = vpop.f32.mrb[0].mxu0
    %1285 = vmatprep.mubr.f32.mxu0 %v617
    %1286 = vmatmul.mubr.f32.gmra.mrb[0].mxu0 %v447
    %v1287 = vpop.f32.mrb[0].mxu0
    %v1288 = vadd.f32 %v948, %v1287
    %v1289 = vpop.f32.mrb[0].mxu0
    %1290 = vmatprep.mubr.f32.mxu0 %v620
    %1291 = vmatmul.mubr.f32.gmra.mrb[0].mxu0 %v451
    %v1292 = vpop.f32.mrb[0].mxu0
    %v1293 = vadd.f32 %v953, %v1292
    %v1294 = vpop.f32.mrb[0].mxu0
    %1295 = vmatprep.mubr.f32.mxu0 %v623
    %1296 = vmatmul.mubr.f32.gmra.mrb[0].mxu0 %v455
    %v1297 = vpop.f32.mrb[0].mxu0
    %v1298 = vadd.f32 %v958, %v1297
    %v1299 = vpop.f32.mrb[0].mxu0
    %1300 = vmatprep.mubr.f32.mxu0 %v626
    %1301 = vmatmul.mubr.f32.gmra.mrb[0].mxu0 %v459
    %v1302 = vpop.f32.mrb[0].mxu0
    %v1303 = vadd.f32 %v963, %v1302
    %v1304 = vpop.f32.mrb[0].mxu0
    %1305 = vmatprep.mubr.f32.mxu0 %v629
    %1306 = vmatmul.mubr.f32.gmra.mrb[0].mxu0 %v463
    %v1307 = vpop.f32.mrb[0].mxu0
    %v1308 = vadd.f32 %v968, %v1307
    %v1309 = vpop.f32.mrb[0].mxu0
    %1310 = vdwg.mxu0
    %vm1311 = vcmask 400384
    %1312 = vst.msk [vmem:[%s2] sm:$0xff] %vm1311, %v1038
    %1313 = vst.msk [vmem:[%s2 + $0x8] sm:$0xff] %vm1311, %v1043
    %1314 = vst.msk [vmem:[%s2 + $0x10] sm:$0xff] %vm1311, %v1048
    %1315 = vst.msk [vmem:[%s2 + $0x18] sm:$0xff] %vm1311, %v1053
    %1316 = vst.msk [vmem:[%s2 + $0x20] sm:$0xff] %vm1311, %v1058
    %1317 = vst.msk [vmem:[%s2 + $0x28] sm:$0xff] %vm1311, %v1063
    %1318 = vst.msk [vmem:[%s2 + $0x30] sm:$0xff] %vm1311, %v1068
    %1319 = vst.msk [vmem:[%s2 + $0x38] sm:$0xff] %vm1311, %v1073
    %1320 = vst.msk [vmem:[%s2 + $0x40] sm:$0xff] %vm1311, %v1078
    %1321 = vst.msk [vmem:[%s2 + $0x48] sm:$0xff] %vm1311, %v1083
    %1322 = vst.msk [vmem:[%s2 + $0x50] sm:$0xff] %vm1311, %v1088
    %1323 = vst.msk [vmem:[%s2 + $0x58] sm:$0xff] %vm1311, %v1093
    %1324 = vst.msk [vmem:[%s2 + $0x60] sm:$0xff] %vm1311, %v1098
    %1325 = vst.msk [vmem:[%s2 + $0x68] sm:$0xff] %vm1311, %v1103
    %1326 = vst.msk [vmem:[%s2 + $0x70] sm:$0xff] %vm1311, %v1108
    %1327 = vst.msk [vmem:[%s2 + $0x78] sm:$0xff] %vm1311, %v1113
    %1328 = vst.msk [vmem:[%s2 + $0x80] sm:$0xff] %vm1311, %v1118
    %1329 = vst.msk [vmem:[%s2 + $0x88] sm:$0xff] %vm1311, %v1123
    %1330 = vst.msk [vmem:[%s2 + $0x90] sm:$0xff] %vm1311, %v1128
    %1331 = vst.msk [vmem:[%s2 + $0x98] sm:$0xff] %vm1311, %v1133
    %1332 = vst.msk [vmem:[%s2 + $0xa0] sm:$0xff] %vm1311, %v1138
    %1333 = vst.msk [vmem:[%s2 + $0xa8] sm:$0xff] %vm1311, %v1143
    %1334 = vst.msk [vmem:[%s2 + $0xb0] sm:$0xff] %vm1311, %v1148
    %1335 = vst.msk [vmem:[%s2 + $0xb8] sm:$0xff] %vm1311, %v1153
    %1336 = vst.msk [vmem:[%s2 + $0xc0] sm:$0xff] %vm1311, %v1158
    %1337 = vst.msk [vmem:[%s2 + $0xc8] sm:$0xff] %vm1311, %v1163
    %1338 = vst.msk [vmem:[%s2 + $0xd0] sm:$0xff] %vm1311, %v1168
    %1339 = vst.msk [vmem:[%s2 + $0xd8] sm:$0xff] %vm1311, %v1173
    %1340 = vst.msk [vmem:[%s2 + $0xe0] sm:$0xff] %vm1311, %v1178
    %1341 = vst.msk [vmem:[%s2 + $0xe8] sm:$0xff] %vm1311, %v1183
    %1342 = vst.msk [vmem:[%s2 + $0xf0] sm:$0xff] %vm1311, %v1188
    %1343 = vst.msk [vmem:[%s2 + $0xf8] sm:$0xff] %vm1311, %v1193
    %1344 = vst.msk [vmem:[%s2 + $0x100] sm:$0xff] %vm1311, %v1198
    %1345 = vst.msk [vmem:[%s2 + $0x108] sm:$0xff] %vm1311, %v1203
    %1346 = vst.msk [vmem:[%s2 + $0x110] sm:$0xff] %vm1311, %v1208
    %1347 = vst.msk [vmem:[%s2 + $0x118] sm:$0xff] %vm1311, %v1213
    %1348 = vst.msk [vmem:[%s2 + $0x120] sm:$0xff] %vm1311, %v1218
    %1349 = vst.msk [vmem:[%s2 + $0x128] sm:$0xff] %vm1311, %v1223
    %1350 = vst.msk [vmem:[%s2 + $0x130] sm:$0xff] %vm1311, %v1228
    %1351 = vst.msk [vmem:[%s2 + $0x138] sm:$0xff] %vm1311, %v1233
    %1352 = vst.msk [vmem:[%s2 + $0x140] sm:$0xff] %vm1311, %v1238
    %1353 = vst.msk [vmem:[%s2 + $0x148] sm:$0xff] %vm1311, %v1243
    %1354 = vst.msk [vmem:[%s2 + $0x150] sm:$0xff] %vm1311, %v1248
    %1355 = vst.msk [vmem:[%s2 + $0x158] sm:$0xff] %vm1311, %v1253
    %1356 = vst.msk [vmem:[%s2 + $0x160] sm:$0xff] %vm1311, %v1258
    %1357 = vst.msk [vmem:[%s2 + $0x168] sm:$0xff] %vm1311, %v1263
    %1358 = vst.msk [vmem:[%s2 + $0x170] sm:$0xff] %vm1311, %v1268
    %1359 = vst.msk [vmem:[%s2 + $0x178] sm:$0xff] %vm1311, %v1273
    %1360 = vst.msk [vmem:[%s2 + $0x180] sm:$0xff] %vm1311, %v1278
    %1361 = vst.msk [vmem:[%s2 + $0x188] sm:$0xff] %vm1311, %v1283
    %1362 = vst.msk [vmem:[%s2 + $0x190] sm:$0xff] %vm1311, %v1288
    %1363 = vst.msk [vmem:[%s2 + $0x198] sm:$0xff] %vm1311, %v1293
    %1364 = vst.msk [vmem:[%s2 + $0x1a0] sm:$0xff] %vm1311, %v1298
    %1365 = vst.msk [vmem:[%s2 + $0x1a8] sm:$0xff] %vm1311, %v1303
    %1366 = vst.msk [vmem:[%s2 + $0x1b0] sm:$0xff] %vm1311, %v1308
    // Predicated region
    $region14: #{tpu_custom_call.1} parent=1 // pred_check
      _
    $region15: #{tpu_custom_call.1} parent=1 // pred_check_branch
      %1368 = sbr.rel (0) target = $region17
    $region16: #{tpu_custom_call.1} parent=1 // pred_region
      _
    $region17: #{tpu_custom_call.1} parent=1 // pred_fallthru
      _
    // Predicated region
    $region18: #{tpu_custom_call.1} parent=1 // pred_check
      _
    $region19: #{tpu_custom_call.1} parent=1 // pred_check_branch
      %1370 = sbr.rel (0) target = $region21
    $region20: #{tpu_custom_call.1} parent=1 // pred_region
      _
    $region21: #{tpu_custom_call.1} parent=1 // pred_fallthru
      _
    %1371 = vsyncpa [#allocation3], 1

</llo_original>
